<compile_context>
chip_gen: v5e
topology: v5e:2x2
jax: 0.10.0
libtpu: 0.0.40
codegen_flags: <defaults>
</compile_context>

<pallas_src>
import jax
import jax.numpy as jnp
from jax.experimental import pallas as pl
from jax.experimental.pallas import tpu as pltpu

FEATURE_SIZE = 180          # per the PyTorch module
MAX_BLOCK_ROWS = 512        # rows per grid step for large batches


def _spatial_sense_kernel(scalars_ref, x_ref, o_ref):
    """scalars_ref: SMEM (3,) = [a, c, k]; x_ref: (BB, 2F) f32; o_ref: (BB, F) f32."""
    a = scalars_ref[0]
    c = scalars_ref[1]
    k = scalars_ref[2]

    # custom sigmoid over the whole block:
    #   (-1/(1+exp(-k*x)) + 1) * 2  ==  1 - tanh(0.5*k*x)
    sig = 1.0 - jnp.tanh((0.5 * k) * x_ref[...])          # (BB, 2F)

    # static in-kernel split of the two halves (lane split; XLU slot is idle)
    sig_s = sig[:, :FEATURE_SIZE]                          # (BB, F)
    sig_n = sig[:, FEATURE_SIZE:]                          # (BB, F)
    delta = sig_n - sig_s

    # Linear(1,8) -> Linear(8,1), no nonlinearity in between, collapses exactly
    # to  proj = delta * a + c.  (Assumption: delta_proj stays purely affine.)
    o_ref[...] = (delta * a + c) * sig_n                   # masked 180-lane store


def prepare_scalars(w1, b1, w2, b2, k):
    """Collapse the two Linear layers into [a, c, k] (once, outside hot path)."""
    w1f = jnp.reshape(w1, (-1,)).astype(jnp.float32)       # (8,)  Linear(1,8).weight
    w2f = jnp.reshape(w2, (-1,)).astype(jnp.float32)       # (8,)  Linear(8,1).weight
    b1f = jnp.reshape(b1, (-1,)).astype(jnp.float32)       # (8,)
    a = jnp.sum(w1f * w2f)
    c = jnp.sum(b1f * w2f) + jnp.reshape(b2, ()).astype(jnp.float32)
    kk = jnp.reshape(k, ()).astype(jnp.float32)
    return jnp.stack([a, c, kk])                           # (3,) float32


@jax.jit
def spatial_sense_forward_batched(inp_batch, scalars):
    """inp_batch: (B, 2*FEATURE_SIZE) -> (B, FEATURE_SIZE)."""
    f = FEATURE_SIZE
    B = inp_batch.shape[0]

    rows8 = pl.cdiv(B, 8) * 8                    # sublane-dense minimum padding
    block_rows = min(MAX_BLOCK_ROWS, rows8)      # big blocks; grid>=2 for B>512
    b_pad = pl.cdiv(rows8, block_rows) * block_rows

    x = inp_batch.astype(jnp.float32)
    if b_pad != B:
        x = jnp.pad(x, ((0, b_pad - B), (0, 0)))

    out = pl.pallas_call(
        _spatial_sense_kernel,
        out_shape=jax.ShapeDtypeStruct((b_pad, f), jnp.float32),
        grid=(b_pad // block_rows,),
        in_specs=[
            pl.BlockSpec(memory_space=pltpu.MemorySpace.SMEM),   # [a, c, k]
            pl.BlockSpec((block_rows, 2 * f), lambda i: (i, 0)),  # full-extent lanes
        ],
        out_specs=pl.BlockSpec((block_rows, f), lambda i: (i, 0)),
        compiler_params=pltpu.CompilerParams(
            dimension_semantics=("parallel",)),                  # v7x: both TCs
    )(scalars, x)

    if b_pad != B:
        out = out[:B]        # padded rows carry the value c -> must not escape
    return out


def spatial_sense_forward(inp, scalars):
    """Single-sample forward matching the PyTorch module: (2*F,) -> (F,)."""
    return spatial_sense_forward_batched(inp[None, :], scalars)[0]


# ----------------------------- parameters & reference -----------------------------

def _xavier_uniform(key, shape):
    fan_out, fan_in = shape
    bound = jnp.sqrt(6.0 / (fan_in + fan_out))
    return jax.random.uniform(key, shape, jnp.float32, minval=-bound, maxval=bound)


def make_params(sensing_range=2.0, seed=0, zero_bias=True):
    key = jax.random.PRNGKey(seed)
    k1, k2, k3, k4 = jax.random.split(key, 4)
    w1 = _xavier_uniform(k1, (8, 1))          # Linear(1, 8).weight
    w2 = _xavier_uniform(k2, (1, 8))          # Linear(8, 1).weight
    if zero_bias:                             # module init: zeros_(bias)
        b1 = jnp.zeros((8,), jnp.float32)
        b2 = jnp.zeros((1,), jnp.float32)
    else:                                     # extra check exercising the c term
        b1 = 0.1 * jax.random.normal(k3, (8,), jnp.float32)
        b2 = 0.1 * jax.random.normal(k4, (1,), jnp.float32)
    # k = inverse_sigmoid(sensing_range, 0.01) = -1/sr * log(0.01 / (2 - 0.01))
    y = jnp.float32(0.01)
    k = (-1.0 / jnp.float32(sensing_range)) * jnp.log(y / (2.0 - y))
    return w1, b1, w2, b2, jnp.reshape(k, (1,))


def reference_forward(inp, w1, b1, w2, b2, k):
    """Pure-JAX mirror of the PyTorch forward (uncollapsed, exp-form sigmoid)."""
    f = FEATURE_SIZE
    sig = lambda x: (-1.0 / (1.0 + jnp.exp(-k[0] * x)) + 1.0) * 2.0
    s = sig(inp[:f])
    sn = sig(inp[f:])
    delta = (sn - s).reshape(-1, 1)
    h = delta @ w1.T + b1
    d = h @ w2.T + b2
    return d.reshape(f) * sn


if __name__ == "__main__":
    key = jax.random.PRNGKey(0)
    k_single, k_batch = jax.random.split(key)

    # Module-faithful params (zero biases).
    w1, b1, w2, b2, k = make_params(sensing_range=2.0, seed=0, zero_bias=True)
    scalars = prepare_scalars(w1, b1, w2, b2, k)

    # Single-sample (module semantics): (360,) -> (180,).
    inp = jax.random.normal(k_single, (2 * FEATURE_SIZE,), jnp.float32)
    out = jax.block_until_ready(spatial_sense_forward(inp, scalars))
    ref = reference_forward(inp, w1, b1, w2, b2, k)
    assert out.shape == (FEATURE_SIZE,)
    assert jnp.allclose(out, ref, atol=2e-5, rtol=1e-4), "single-sample mismatch"

    # Small batch (B not a multiple of 8 -> exercises pad + tail slice path).
    B = 13
    inp_b = jax.random.normal(k_batch, (B, 2 * FEATURE_SIZE), jnp.float32)
    out_b = jax.block_until_ready(spatial_sense_forward_batched(inp_b, scalars))
    ref_b = jax.vmap(lambda r: reference_forward(r, w1, b1, w2, b2, k))(inp_b)
    assert out_b.shape == (B, FEATURE_SIZE)
    assert jnp.allclose(out_b, ref_b, atol=2e-5, rtol=1e-4), "batched mismatch"

    # Nonzero-bias check (exercises the collapsed constant c).
    w1n, b1n, w2n, b2n, kn = make_params(sensing_range=2.0, seed=0, zero_bias=False)
    scalars_n = prepare_scalars(w1n, b1n, w2n, b2n, kn)
    out_n = jax.block_until_ready(spatial_sense_forward_batched(inp_b, scalars_n))
    ref_n = jax.vmap(lambda r: reference_forward(r, w1n, b1n, w2n, b2n, kn))(inp_b)
    assert jnp.allclose(out_n, ref_n, atol=2e-5, rtol=1e-4), "bias-term mismatch"

    print("KERNEL_OK")
</pallas_src>

<mosaic_0001>
module attributes {stable_mosaic.version = 11 : i64} {
  func.func @_spatial_sense_kernel(%arg0: i32, %arg1: memref<3xf32, #tpu.memory_space<smem>>, %arg2: memref<8x360xf32, #tpu.memory_space<vmem>>, %arg3: memref<8x180xf32, #tpu.memory_space<vmem>>) attributes {dimension_semantics = [#tpu.dimension_semantics<parallel>], iteration_bounds = array<i64: 1>, scalar_prefetch = 0 : i64, scratch_operands = 0 : i64, tpu.core_type = #tpu.core_type<tc>, window_params = [{transform_indices = @transform_0, window_bounds = array<i64: 3>}, {transform_indices = @transform_1, window_bounds = array<i64: 8, 360>}, {transform_indices = @transform_2, window_bounds = array<i64: 8, 180>}]} {
    %c0 = arith.constant 0 : index
    %0 = memref.load %arg1[%c0] : memref<3xf32, #tpu.memory_space<smem>>
    %c1 = arith.constant 1 : index
    %1 = memref.load %arg1[%c1] : memref<3xf32, #tpu.memory_space<smem>>
    %c2 = arith.constant 2 : index
    %2 = memref.load %arg1[%c2] : memref<3xf32, #tpu.memory_space<smem>>
    %cst = arith.constant 5.000000e-01 : f32
    %3 = arith.mulf %cst, %2 : f32
    %c0_0 = arith.constant 0 : index
    %c0_1 = arith.constant 0 : index
    %4 = vector.load %arg2[%c0_0, %c0_1] : memref<8x360xf32, #tpu.memory_space<vmem>>, vector<8x360xf32>
    %5 = vector.broadcast %3 : f32 to vector<8x360xf32>
    %6 = arith.mulf %5, %4 : vector<8x360xf32>
    %7 = math.tanh %6 : vector<8x360xf32>
    %cst_2 = arith.constant 1.000000e+00 : f32
    %8 = vector.broadcast %cst_2 : f32 to vector<8x360xf32>
    %9 = arith.subf %8, %7 : vector<8x360xf32>
    %10 = vector.extract_strided_slice %9 {offsets = [0, 0], sizes = [8, 180], strides = [1, 1]} : vector<8x360xf32> to vector<8x180xf32>
    %11 = vector.extract_strided_slice %9 {offsets = [0, 180], sizes = [8, 180], strides = [1, 1]} : vector<8x360xf32> to vector<8x180xf32>
    %12 = arith.subf %11, %10 : vector<8x180xf32>
    %13 = vector.broadcast %0 : f32 to vector<8x180xf32>
    %14 = arith.mulf %12, %13 : vector<8x180xf32>
    %15 = vector.broadcast %1 : f32 to vector<8x180xf32>
    %16 = arith.addf %14, %15 : vector<8x180xf32>
    %17 = arith.mulf %16, %11 : vector<8x180xf32>
    %c0_3 = arith.constant 0 : index
    %c0_4 = arith.constant 0 : index
    %18 = vector.load %arg3[%c0_3, %c0_4] : memref<8x180xf32, #tpu.memory_space<vmem>>, vector<8x180xf32>
    tpu.vector_store %arg3[%c0_3, %c0_4], %17 {strides = array<i32>} : memref<8x180xf32, #tpu.memory_space<vmem>>, vector<8x180xf32>,
    return
  }
  func.func @transform_0(%arg0: i32) -> i32 {
    %c0_i32 = arith.constant 0 : i32
    %c0_i32_0 = arith.constant 0 : i32
    return %c0_i32 : i32
  }
  func.func @transform_1(%arg0: i32) -> (i32, i32) {
    %c0_i32 = arith.constant 0 : i32
    %c0_i32_0 = arith.constant 0 : i32
    return %arg0, %c0_i32 : i32, i32
  }
  func.func @transform_2(%arg0: i32) -> (i32, i32) {
    %c0_i32 = arith.constant 0 : i32
    %c0_i32_0 = arith.constant 0 : i32
    return %arg0, %c0_i32 : i32, i32
  }
}

</mosaic_0001>

<llo_original>
// kernel: spatial_sense_forward_batched.1
$region0: #{spatial_sense_forward_batched.1}
  #allocation0 [shape = 'u32[]', space=smem, size = 0x4, offset = 0x4, fixed_abs, tag = 'smem constant byte address 0x4 - core index']
  #allocation1 [shape = 'u32[72,128]{1,0:T(1,128)}', space=vmem, size = 0x9000, scoped, tag = 'internal scratch']
  %s0 = inlined_call_operand.vmem [shape: f32[3], index: 0, kind: input, shape index: {}]
  %s1 = inlined_call_operand.vmem [shape: f32[8,360], index: 1, kind: input, shape index: {}]
  %s2 = inlined_call_operand.vmem [shape: f32[8,180], index: 2, kind: output, shape index: {}]
  %s3 = sld [smem:[#allocation0]]
  $region22: #{spatial_sense_forward_batched.1} parent=0
    _
  %s5 = ssub.s32 1, %s3
  %s6 = scalar_select 0, %s5, %s3
  $region1: #{spatial_sense_forward_batched.1} parent=0
    #allocation2 [shape = 'u8[512]{0}', space=smem, size = 0x200, scoped, tag = 'input window, operand 0, single buffered']
    #allocation3 [shape = 's32[1]{0}', space=sflag, size = 0x4, scoped, tag = 'scoped memory for spatial_sense_forward_batched.1']
    %7 = vsyncpa [#allocation3], 0
    // Predicated region
    $region2: #{spatial_sense_forward_batched.1} parent=1 // pred_check
      _
    $region3: #{spatial_sense_forward_batched.1} parent=1 // pred_check_branch
      %9 = sbr.rel (0) target = $region5
    $region4: #{spatial_sense_forward_batched.1} parent=1 // pred_region
      %11 = vsyncadd [#allocation3], 0
      %s13 = sshll.u32 %s0, 4
      %s14 = int_to_ptr.vmem [resolvable:$true] %s13
      %16 = dma.vmem_to_smem %s14, 16, [#allocation2], [#allocation3]
    $region5: #{spatial_sense_forward_batched.1} parent=1 // pred_fallthru
      _
    // Predicated region
    $region6: #{spatial_sense_forward_batched.1} parent=1 // pred_check
      _
    $region7: #{spatial_sense_forward_batched.1} parent=1 // pred_check_branch
      %18 = sbr.rel (0) target = $region9
    $region8: #{spatial_sense_forward_batched.1} parent=1 // pred_region
      _
    $region9: #{spatial_sense_forward_batched.1} parent=1 // pred_fallthru
      _
    // Predicated region
    $region10: #{spatial_sense_forward_batched.1} parent=1 // pred_check
      _
    $region11: #{spatial_sense_forward_batched.1} parent=1 // pred_check_branch
      %20 = sbr.rel (0) target = $region13
    $region12: #{spatial_sense_forward_batched.1} parent=1 // pred_region
      %22 = dma.done [#allocation3], 16
    $region13: #{spatial_sense_forward_batched.1} parent=1 // pred_fallthru
      _
    %23 = sfence
    %s24 = sld [smem:[#allocation2]]
    %s25 = sld [smem:[#allocation2 + $0x1]]
    %s26 = sld [smem:[#allocation2 + $0x2]]
    %s27 = smul.f32 %s26, 0.5
    %v28 = vld [vmem:[%s1] sm:$0xff]
    %v29 = vld [vmem:[%s1 + $0x8] sm:$0xff]
    %v30 = vld [vmem:[%s1 + $0x10] sm:$0xff]
    %v31 = vstv %s27
    %v32 = vmul.f32 %v31, %v28
    %v33 = vmul.f32 %v31, %v29
    %v34 = vmul.f32 %v31, %v30
    %v35 = vtanh.pop %v32
    %v36 = vtanh.pop %v33
    %v37 = vtanh.pop %v34
    %v38 = vsub.f32 1.0, %v35
    %v39 = vsub.f32 1.0, %v36
    %v40 = vsub.f32 1.0, %v37
    %43 = vrot.lane.b32.xlu0 %v38, 52
    %v44 = vpop.permute.xlu0 %43
    %45 = vrot.lane.b32.xlu0 %v39, 52
    %v46 = vpop.permute.xlu0 %45
    %vm47 = vcmask 424960
    %v48 = vsel %vm47, %v44, %v46
    %v51 = vsub.f32 %v39, %v44
    %v52 = vsub.f32 %v40, %v48
    %v53 = vstv %s24
    %v54 = vmul.f32 %v51, %v53
    %v55 = vmul.f32 %v52, %v53
    %v56 = vstv %s25
    %v57 = vadd.f32 %v54, %v56
    %v58 = vadd.f32 %v55, %v56
    %v59 = vmul.f32 %v57, %v39
    %v60 = vmul.f32 %v58, %v40
    %63 = vrot.lane.b32.xlu0 %v59, 76
    %v64 = vpop.permute.xlu0 %63
    %65 = vrot.lane.b32.xlu0 %v60, 76
    %v66 = vpop.permute.xlu0 %65
    %vm67 = vcmask 621568
    %v68 = vsel %vm67, %v64, %v66
    %71 = vst [vmem:[%s2] sm:$0xff] %v68
    %72 = vst.msk [vmem:[%s2 + $0x8] sm:$0xff] %vm47, %v66
    // Predicated region
    $region14: #{spatial_sense_forward_batched.1} parent=1 // pred_check
      _
    $region15: #{spatial_sense_forward_batched.1} parent=1 // pred_check_branch
      %74 = sbr.rel (0) target = $region17
    $region16: #{spatial_sense_forward_batched.1} parent=1 // pred_region
      _
    $region17: #{spatial_sense_forward_batched.1} parent=1 // pred_fallthru
      _
    // Predicated region
    $region18: #{spatial_sense_forward_batched.1} parent=1 // pred_check
      _
    $region19: #{spatial_sense_forward_batched.1} parent=1 // pred_check_branch
      %76 = sbr.rel (0) target = $region21
    $region20: #{spatial_sense_forward_batched.1} parent=1 // pred_region
      _
    $region21: #{spatial_sense_forward_batched.1} parent=1 // pred_fallthru
      _
    %77 = vsyncpa [#allocation3], 1

</llo_original>
